<compile_context>
chip_gen: v5e
topology: v5e:2x2
jax: 0.10.0
libtpu: 0.0.40
codegen_flags: <defaults>
</compile_context>

<pallas_src>
import functools

import jax
import jax.numpy as jnp
from jax.experimental import pallas as pl
from jax.experimental.pallas import tpu as pltpu

LANES = 128
SUBLANES = 8
_ALIGN = SUBLANES * LANES        # 1024 elements = one f32 vreg footprint
TILE_ROWS = 8192                 # 4 MiB f32 per input block per step
NUM_CORE_SPLITS = 2              # leading 'parallel' axis -> both TCs on v7x


def _soft_iou_kernel(pred_ref, target_ref, inter_ref, sumpt_ref, *,
                     num_blocks, blocks_per_core, valid_rows_last):
    c = pl.program_id(0)                       # core split (parallel)
    i = pl.program_id(1)                       # row-block sweep (arbitrary)
    g = c * blocks_per_core + i                # global row-block index
    tile_rows, lanes = pred_ref.shape          # static block shape

    # Output blocks are resident across the whole i-sweep (their block index
    # only depends on c), so they double as per-core accumulators.
    @pl.when(i == 0)
    def _():
        inter_ref[...] = jnp.zeros_like(inter_ref)
        sumpt_ref[...] = jnp.zeros_like(sumpt_ref)

    def accumulate(n_rows):
        # sigmoid(x) = 0.5*(tanh(x/2)+1): tanh goes to the EUP slot, leaving
        # the VALU slot for the streaming muls/adds.
        x = pred_ref[0:n_rows, :].astype(jnp.float32)
        t = target_ref[0:n_rows, :].astype(jnp.float32)
        p = 0.5 * jnp.tanh(0.5 * x) + 0.5
        # Fold (n_rows, 128) -> (8, 128): pure cross-vreg VPU adds; the final
        # cross-lane reduce happens in the wrapper on a tiny array.
        inter_c = jnp.sum((p * t).reshape(n_rows // SUBLANES, SUBLANES, lanes), axis=0)
        sumpt_c = jnp.sum((p + t).reshape(n_rows // SUBLANES, SUBLANES, lanes), axis=0)
        inter_ref[0, :, :] = inter_ref[0, :, :] + inter_c
        sumpt_ref[0, :, :] = sumpt_ref[0, :, :] + sumpt_c

    if valid_rows_last == tile_rows:
        # Every real block is full; only skip the (clamped) overhang block a
        # core may see when num_blocks isn't a multiple of the core split.
        @pl.when(g < num_blocks)
        def _():
            accumulate(tile_rows)
    else:
        @pl.when(g < num_blocks - 1)
        def _():
            accumulate(tile_rows)

        # Ragged last block: only its first valid_rows_last rows hold real
        # data (Pallas leaves the rest of the block buffer undefined).  The
        # bound is static and a multiple of 8, so this is a free sublane-
        # aligned slice — no iota / compare / select on any step.
        @pl.when(g == num_blocks - 1)
        def _():
            accumulate(valid_rows_last)


def soft_iou_with_sigmoid_loss(pred, target, *, tile_rows=TILE_ROWS):
    """Pallas equivalent of SoftIoUWithSigmoidLoss.forward(pred, target)."""
    assert pred.shape == target.shape
    total = pred.size

    pred_flat = jnp.ravel(pred)          # metadata-only for contiguous inputs
    target_flat = jnp.ravel(target)

    rem = total % _ALIGN
    aligned = total - rem

    # Tail (< 1024 elements): plain-JAX reduction in the wrapper instead of a
    # full-array pad copy (which would roughly double HBM traffic).
    if rem:
        tp = jax.nn.sigmoid(pred_flat[aligned:].astype(jnp.float32))
        tt = target_flat[aligned:].astype(jnp.float32)
        tail_inter = jnp.sum(tp * tt)
        tail_sumpt = jnp.sum(tp + tt)
    else:
        tail_inter = jnp.float32(0.0)
        tail_sumpt = jnp.float32(0.0)

    if aligned == 0:
        inter = tail_inter
        sumpt = tail_sumpt
    else:
        pred_main = pred_flat[:aligned] if rem else pred_flat
        target_main = target_flat[:aligned] if rem else target_flat

        rows = aligned // LANES                       # multiple of 8
        pred2d = pred_main.reshape(rows, LANES)
        target2d = target_main.reshape(rows, LANES)

        tile_rows = min(tile_rows, rows)              # small inputs -> 1 block
        assert tile_rows % SUBLANES == 0
        num_blocks = pl.cdiv(rows, tile_rows)
        blocks_per_core = pl.cdiv(num_blocks, NUM_CORE_SPLITS)
        valid_rows_last = rows - (num_blocks - 1) * tile_rows

        kernel = functools.partial(
            _soft_iou_kernel,
            num_blocks=num_blocks,
            blocks_per_core=blocks_per_core,
            valid_rows_last=valid_rows_last,
        )

        # Clamp so every issued block index is in-bounds; the kernel skips the
        # duplicated overhang block via the g < num_blocks guard.
        def in_map(c, i):
            return (jnp.minimum(c * blocks_per_core + i, num_blocks - 1), 0)

        def out_map(c, i):
            return (c, 0, 0)

        itemsize = pred2d.dtype.itemsize + target2d.dtype.itemsize
        cost = pl.CostEstimate(
            flops=5 * aligned,
            transcendentals=aligned,                  # one tanh per element
            bytes_accessed=aligned * itemsize
            + 2 * NUM_CORE_SPLITS * SUBLANES * LANES * 4,
        )

        inter_p, sumpt_p = pl.pallas_call(
            kernel,
            out_shape=(
                jax.ShapeDtypeStruct((NUM_CORE_SPLITS, SUBLANES, LANES), jnp.float32),
                jax.ShapeDtypeStruct((NUM_CORE_SPLITS, SUBLANES, LANES), jnp.float32),
            ),
            grid_spec=pltpu.PrefetchScalarGridSpec(
                num_scalar_prefetch=0,
                grid=(NUM_CORE_SPLITS, blocks_per_core),
                in_specs=[
                    pl.BlockSpec((tile_rows, LANES), in_map),
                    pl.BlockSpec((tile_rows, LANES), in_map),
                ],
                out_specs=[
                    pl.BlockSpec((1, SUBLANES, LANES), out_map),
                    pl.BlockSpec((1, SUBLANES, LANES), out_map),
                ],
            ),
            compiler_params=pltpu.CompilerParams(
                dimension_semantics=("parallel", "arbitrary"),
                vmem_limit_bytes=32 * 1024 * 1024,
            ),
            cost_estimate=cost,
        )(pred2d, target2d)

        inter = jnp.sum(inter_p) + tail_inter
        sumpt = jnp.sum(sumpt_p) + tail_sumpt

    # union = sum(p + t - p*t) = sum(p + t) - inter.  No epsilon, matching the
    # PyTorch reference (union == 0 -> NaN, same as torch).
    union = sumpt - inter
    return 1.0 - inter / union


def _reference(pred, target):
    p = jax.nn.sigmoid(pred.astype(jnp.float32))
    t = target.astype(jnp.float32)
    inter = jnp.sum(p * t)
    union = jnp.sum(p + t - p * t)
    return 1.0 - inter / union


if __name__ == "__main__":
    key = jax.random.PRNGKey(0)
    k1, k2, k3, k4, k5, k6 = jax.random.split(key, 6)

    # 1) Small aligned NCHW logits / binary targets (single block).
    pred = jax.random.normal(k1, (2, 4, 16, 16), dtype=jnp.float32)
    target = (jax.random.uniform(k2, (2, 4, 16, 16)) > 0.5).astype(jnp.float32)
    loss = jax.block_until_ready(soft_iou_with_sigmoid_loss(pred, target))
    ref = _reference(pred, target)
    assert jnp.allclose(loss, ref, atol=1e-5, rtol=1e-4), (loss, ref)

    # 2) Ragged total (not a multiple of 8*128): wrapper-side tail reduction.
    pred2 = jax.random.normal(k3, (3, 5, 7, 11), dtype=jnp.float32)
    target2 = (jax.random.uniform(k4, (3, 5, 7, 11)) > 0.5).astype(jnp.float32)
    loss2 = jax.block_until_ready(soft_iou_with_sigmoid_loss(pred2, target2))
    ref2 = _reference(pred2, target2)
    assert jnp.allclose(loss2, ref2, atol=1e-5, rtol=1e-4), (loss2, ref2)

    # 3) Multi-block grid with a ragged last block and both core partitions
    #    active: rows=320, tile_rows=48 -> 7 blocks (last one 32 valid rows),
    #    4 blocks on core split 0 and 3 (+1 skipped overhang) on split 1.
    pred3 = jax.random.normal(k5, (4, 8, 32, 40), dtype=jnp.float32)
    target3 = (jax.random.uniform(k6, (4, 8, 32, 40)) > 0.5).astype(jnp.float32)
    loss3 = jax.block_until_ready(
        soft_iou_with_sigmoid_loss(pred3, target3, tile_rows=48))
    ref3 = _reference(pred3, target3)
    assert jnp.allclose(loss3, ref3, atol=1e-5, rtol=1e-4), (loss3, ref3)

    print("KERNEL_OK")
</pallas_src>

<mosaic_0001>
module attributes {stable_mosaic.version = 11 : i64} {
  func.func @_soft_iou_kernel(%arg0: i32, %arg1: i32, %arg2: memref<16x128xf32, #tpu.memory_space<vmem>>, %arg3: memref<16x128xf32, #tpu.memory_space<vmem>>, %arg4: memref<1x8x128xf32, #tpu.memory_space<vmem>>, %arg5: memref<1x8x128xf32, #tpu.memory_space<vmem>>) attributes {dimension_semantics = [#tpu.dimension_semantics<parallel>, #tpu.dimension_semantics<arbitrary>], iteration_bounds = array<i64: 2, 1>, scalar_prefetch = 0 : i64, scratch_operands = 0 : i64, tpu.core_type = #tpu.core_type<tc>, window_params = [{transform_indices = @transform_0, window_bounds = array<i64: 16, 128>}, {transform_indices = @transform_1, window_bounds = array<i64: 16, 128>}, {transform_indices = @transform_2, window_bounds = array<i64: 1, 8, 128>}, {transform_indices = @transform_3, window_bounds = array<i64: 1, 8, 128>}]} {
    %c1_i32 = arith.constant 1 : i32
    %0 = arith.muli %arg0, %c1_i32 : i32
    %1 = arith.addi %0, %arg1 : i32
    %c0_i32 = arith.constant 0 : i32
    %2 = arith.cmpi eq, %arg1, %c0_i32 : i32
    %3 = arith.extui %2 : i1 to i32
    %c0_i32_0 = arith.constant 0 : i32
    %4 = arith.cmpi ne, %3, %c0_i32_0 : i32
    scf.if %4 {
      %cst = arith.constant 0.000000e+00 : f32
      %8 = vector.broadcast %cst : f32 to vector<1x8x128xf32>
      %c0 = arith.constant 0 : index
      %c0_3 = arith.constant 0 : index
      %c0_4 = arith.constant 0 : index
      %9 = vector.load %arg4[%c0, %c0_3, %c0_4] : memref<1x8x128xf32, #tpu.memory_space<vmem>>, vector<1x8x128xf32>
      tpu.vector_store %arg4[%c0, %c0_3, %c0_4], %8 {strides = array<i32>} : memref<1x8x128xf32, #tpu.memory_space<vmem>>, vector<1x8x128xf32>,
      %cst_5 = arith.constant 0.000000e+00 : f32
      %10 = vector.broadcast %cst_5 : f32 to vector<1x8x128xf32>
      %c0_6 = arith.constant 0 : index
      %c0_7 = arith.constant 0 : index
      %c0_8 = arith.constant 0 : index
      %11 = vector.load %arg5[%c0_6, %c0_7, %c0_8] : memref<1x8x128xf32, #tpu.memory_space<vmem>>, vector<1x8x128xf32>
      tpu.vector_store %arg5[%c0_6, %c0_7, %c0_8], %10 {strides = array<i32>} : memref<1x8x128xf32, #tpu.memory_space<vmem>>, vector<1x8x128xf32>,
    } else {
    }
    %c1_i32_1 = arith.constant 1 : i32
    %5 = arith.cmpi slt, %1, %c1_i32_1 : i32
    %6 = arith.extui %5 : i1 to i32
    %c0_i32_2 = arith.constant 0 : i32
    %7 = arith.cmpi ne, %6, %c0_i32_2 : i32
    scf.if %7 {
      %c0 = arith.constant 0 : index
      %c0_3 = arith.constant 0 : index
      %8 = vector.load %arg2[%c0, %c0_3] : memref<16x128xf32, #tpu.memory_space<vmem>>, vector<16x128xf32>
      %c0_4 = arith.constant 0 : index
      %c0_5 = arith.constant 0 : index
      %9 = vector.load %arg3[%c0_4, %c0_5] : memref<16x128xf32, #tpu.memory_space<vmem>>, vector<16x128xf32>
      %cst = arith.constant 5.000000e-01 : f32
      %10 = vector.broadcast %cst : f32 to vector<16x128xf32>
      %11 = arith.mulf %10, %8 : vector<16x128xf32>
      %12 = math.tanh %11 : vector<16x128xf32>
      %cst_6 = arith.constant 5.000000e-01 : f32
      %13 = vector.broadcast %cst_6 : f32 to vector<16x128xf32>
      %14 = arith.mulf %13, %12 : vector<16x128xf32>
      %cst_7 = arith.constant 5.000000e-01 : f32
      %15 = vector.broadcast %cst_7 : f32 to vector<16x128xf32>
      %16 = arith.addf %14, %15 : vector<16x128xf32>
      %17 = arith.mulf %16, %9 : vector<16x128xf32>
      %18 = vector.shape_cast %17 : vector<16x128xf32> to vector<2x8x128xf32>
      %cst_8 = arith.constant dense<0.000000e+00> : vector<8x128xf32>
      %19 = vector.multi_reduction <add>, %18, %cst_8 [0] : vector<2x8x128xf32> to vector<8x128xf32>
      %20 = arith.addf %16, %9 : vector<16x128xf32>
      %21 = vector.shape_cast %20 : vector<16x128xf32> to vector<2x8x128xf32>
      %cst_9 = arith.constant dense<0.000000e+00> : vector<8x128xf32>
      %22 = vector.multi_reduction <add>, %21, %cst_9 [0] : vector<2x8x128xf32> to vector<8x128xf32>
      %c0_10 = arith.constant 0 : index
      %c0_11 = arith.constant 0 : index
      %c0_12 = arith.constant 0 : index
      %23 = vector.load %arg4[%c0_10, %c0_11, %c0_12] : memref<1x8x128xf32, #tpu.memory_space<vmem>>, vector<1x8x128xf32>
      %24 = vector.shape_cast %23 : vector<1x8x128xf32> to vector<8x128xf32>
      %25 = arith.addf %24, %19 : vector<8x128xf32>
      %c0_13 = arith.constant 0 : index
      %c0_14 = arith.constant 0 : index
      %c0_15 = arith.constant 0 : index
      %26 = vector.load %arg4[%c0_13, %c0_14, %c0_15] : memref<1x8x128xf32, #tpu.memory_space<vmem>>, vector<1x8x128xf32>
      %27 = vector.shape_cast %26 : vector<1x8x128xf32> to vector<8x128xf32>
      %28 = vector.shape_cast %25 : vector<8x128xf32> to vector<1x8x128xf32>
      tpu.vector_store %arg4[%c0_13, %c0_14, %c0_15], %28 {strides = array<i32>} : memref<1x8x128xf32, #tpu.memory_space<vmem>>, vector<1x8x128xf32>,
      %c0_16 = arith.constant 0 : index
      %c0_17 = arith.constant 0 : index
      %c0_18 = arith.constant 0 : index
      %29 = vector.load %arg5[%c0_16, %c0_17, %c0_18] : memref<1x8x128xf32, #tpu.memory_space<vmem>>, vector<1x8x128xf32>
      %30 = vector.shape_cast %29 : vector<1x8x128xf32> to vector<8x128xf32>
      %31 = arith.addf %30, %22 : vector<8x128xf32>
      %c0_19 = arith.constant 0 : index
      %c0_20 = arith.constant 0 : index
      %c0_21 = arith.constant 0 : index
      %32 = vector.load %arg5[%c0_19, %c0_20, %c0_21] : memref<1x8x128xf32, #tpu.memory_space<vmem>>, vector<1x8x128xf32>
      %33 = vector.shape_cast %32 : vector<1x8x128xf32> to vector<8x128xf32>
      %34 = vector.shape_cast %31 : vector<8x128xf32> to vector<1x8x128xf32>
      tpu.vector_store %arg5[%c0_19, %c0_20, %c0_21], %34 {strides = array<i32>} : memref<1x8x128xf32, #tpu.memory_space<vmem>>, vector<1x8x128xf32>,
    } else {
    }
    return
  }
  func.func @transform_0(%arg0: i32, %arg1: i32) -> (i32, i32) {
    %c1_i32 = arith.constant 1 : i32
    %0 = arith.muli %arg0, %c1_i32 : i32
    %1 = arith.addi %0, %arg1 : i32
    %c0_i32 = arith.constant 0 : i32
    %2 = arith.minsi %1, %c0_i32 : i32
    %c0_i32_0 = arith.constant 0 : i32
    %c0_i32_1 = arith.constant 0 : i32
    return %2, %c0_i32_0 : i32, i32
  }
  func.func @transform_1(%arg0: i32, %arg1: i32) -> (i32, i32) {
    %c1_i32 = arith.constant 1 : i32
    %0 = arith.muli %arg0, %c1_i32 : i32
    %1 = arith.addi %0, %arg1 : i32
    %c0_i32 = arith.constant 0 : i32
    %2 = arith.minsi %1, %c0_i32 : i32
    %c0_i32_0 = arith.constant 0 : i32
    %c0_i32_1 = arith.constant 0 : i32
    return %2, %c0_i32_0 : i32, i32
  }
  func.func @transform_2(%arg0: i32, %arg1: i32) -> (i32, i32, i32) {
    %c0_i32 = arith.constant 0 : i32
    %c0_i32_0 = arith.constant 0 : i32
    %c0_i32_1 = arith.constant 0 : i32
    return %arg0, %c0_i32, %c0_i32_0 : i32, i32, i32
  }
  func.func @transform_3(%arg0: i32, %arg1: i32) -> (i32, i32, i32) {
    %c0_i32 = arith.constant 0 : i32
    %c0_i32_0 = arith.constant 0 : i32
    %c0_i32_1 = arith.constant 0 : i32
    return %arg0, %c0_i32, %c0_i32_0 : i32, i32, i32
  }
}

</mosaic_0001>

<llo_original>
// kernel: tpu_custom_call.1
$region0: #{tpu_custom_call.1}
  #allocation0 [shape = 'u32[]', space=smem, size = 0x4, offset = 0x4, fixed_abs, tag = 'smem constant byte address 0x4 - core index']
  #allocation1 [shape = 'u32[72,128]{1,0:T(1,128)}', space=vmem, size = 0x9000, scoped, tag = 'internal scratch']
  %s0 = inlined_call_operand.hbm [shape: f32[16,128], index: 0, kind: input, shape index: {}]
  %s1 = inlined_call_operand.hbm [shape: f32[16,128], index: 1, kind: input, shape index: {}]
  %s2 = inlined_call_operand.hbm [shape: f32[2,8,128], index: 2, kind: output, shape index: {0}]
  %s3 = inlined_call_operand.hbm [shape: f32[2,8,128], index: 3, kind: output, shape index: {1}]
  %4 = xla_tuple %s2, %s3
  %s5 = sld [smem:[#allocation0]]
  $region65: #{tpu_custom_call.1} parent=0
    _
  %s7 = ssub.s32 1, %s5
  %s8 = scalar_select 0, %s7, %s5
  $region1: #{tpu_custom_call.1} parent=0
    #allocation2 [shape = 'u8[16384]{0}', space=vmem, size = 0x4000, scoped, tag = 'input window, operand 0']
    #allocation3 [shape = 's32[2]{0}', space=sflag, size = 0x8, scoped, tag = 'scoped memory for tpu_custom_call.1']
    #allocation4 [shape = 's32[2]{0}', space=sflag, size = 0x8, scoped, tag = 'scoped memory for tpu_custom_call.1']
    #allocation5 [shape = 'u8[16384]{0}', space=vmem, size = 0x4000, scoped, tag = 'input window, operand 1']
    #allocation6 [shape = 's32[2]{0}', space=sflag, size = 0x8, scoped, tag = 'scoped memory for tpu_custom_call.1']
    #allocation7 [shape = 'u8[8192]{0}', space=vmem, size = 0x2000, scoped, tag = 'output window, operand 0']
    #allocation8 [shape = 'u8[8192]{0}', space=vmem, size = 0x2000, scoped, tag = 'output window, operand 1']
    #allocation9 [shape = 's32[2]{0}', space=sflag, size = 0x8, scoped, tag = 'scoped memory for tpu_custom_call.1']
    %9 = vsyncpa [#allocation3], 0
    %s10 = scalar_lea.sflag [#allocation3], 1
    %11 = vsyncpa %s10, 0
    %12 = vsyncpa [#allocation6], 0
    %s13 = scalar_lea.sflag [#allocation6], 1
    %14 = vsyncpa %s13, 0
    %15 = vsyncpa [#allocation4], 0
    %s16 = scalar_lea.sflag [#allocation4], 1
    %17 = vsyncpa %s16, 0
    %18 = vsyncpa [#allocation9], 0
    %s19 = scalar_lea.sflag [#allocation9], 1
    %20 = vsyncpa %s19, 0
    loop: start=0, step=1, limit=4
    $region2: #{tpu_custom_call.1} parent=1 // loop_pre_header
      _
    $region3: #{tpu_custom_call.1} parent=1 // loop_header
      %s22 = sphi 0, %s26
      %p23 = scmp.ge.s32.totalorder %s22, 4
      %s29 = sphi 0, %s41
      %s30 = sphi 0, %s37
      %s31 = sphi 0, %s29
      %s32 = sphi 0, %s30
      %s33 = sphi 0, %s31
      %s34 = sphi 0, %s32
      %s50 = sphi 0, %s52
      %s53 = sphi 0, %s50
      %s54 = sphi 0, %s53
      %s70 = sphi 0, %s54
      %s82 = sphi 0, %s84
      %s85 = sphi 0, %s82
      %s86 = sphi 0, %s85
      %s102 = sphi 0, %s86
      %s108 = sphi 0, %s110
      %s111 = sphi 0, %s108
      %s112 = sphi 0, %s111
      %s128 = sphi 0, %s112
      %s134 = sphi 0, %s136
      %s137 = sphi 0, %s134
      %s138 = sphi 0, %s137
      %s154 = sphi 0, %s138
    $region4: #{tpu_custom_call.1} parent=1 // loop_header_branch
      %25 = sbr.rel (%p23) target = $region8
    $region5: #{tpu_custom_call.1} parent=1 // loop_body
      %s27 = ssub.s32 %s22, 1
      %s28 = ssub.s32 %s22, 2
      %s35 = sadd.s32 1, %s30
      %p36 = scmp.ge.s32.totalorder %s35, 1
      %s37 = scalar_select %p36, 0, %s35
      %s38 = sadd.s32 1, %s29
      %s39 = scalar_select %p36, %s38, %s29
      %p40 = scmp.ge.s32.totalorder %s39, 2
      %s41 = scalar_select %p40, 0, %s39
      %s42 = sadd.s32 %s29, %s30
      %p43 = scmp.lt.s32.totalorder %s42, 0
      %s44 = scalar_select %p43, %s42, 0
      %s45 = sadd.s32 %s41, %s37
      %p46 = scmp.lt.s32.totalorder %s45, 0
      %s47 = scalar_select %p46, %s45, 0
      %s48 = ssub.s32 %s44, %s47
      %p49 = scmp.eq.s32.totalorder %s48, 0
      %s51 = sadd.s32 %s50, 1
      %s52 = scalar_select %p49, %s50, %s51
      %p55 = pneg %p49
      %p56 = scmp.eq.s32.totalorder %s22, 1
      %p57 = por %p55, %p56
      %p58 = scmp.ne.s32.totalorder %s50, %s53
      %p59 = scmp.eq.s32.totalorder %s22, 0
      %p60 = por %p58, %p59
      %p61 = scmp.ne.s32.totalorder %s50, %s53
      %p62 = scmp.eq.s32.totalorder %s27, 1
      %p63 = por %p61, %p62
      %p64 = scmp.ne.s32.totalorder %s53, %s54
      %p65 = scmp.eq.s32.totalorder %s27, 0
      %p66 = por %p64, %p65
      %p67 = scmp.ne.s32.totalorder %s53, %s54
      %p68 = scmp.eq.s32.totalorder %s28, 1
      %p69 = por %p67, %p68
      %p71 = scmp.ne.s32.totalorder %s54, %s70
      %p72 = scmp.eq.s32.totalorder %s28, 0
      %p73 = por %p71, %p72
      %s74 = sadd.s32 %s29, %s30
      %p75 = scmp.lt.s32.totalorder %s74, 0
      %s76 = scalar_select %p75, %s74, 0
      %s77 = sadd.s32 %s41, %s37
      %p78 = scmp.lt.s32.totalorder %s77, 0
      %s79 = scalar_select %p78, %s77, 0
      %s80 = ssub.s32 %s76, %s79
      %p81 = scmp.eq.s32.totalorder %s80, 0
      %s83 = sadd.s32 %s82, 1
      %s84 = scalar_select %p81, %s82, %s83
      %p87 = pneg %p81
      %p88 = scmp.eq.s32.totalorder %s22, 1
      %p89 = por %p87, %p88
      %p90 = scmp.ne.s32.totalorder %s82, %s85
      %p91 = scmp.eq.s32.totalorder %s22, 0
      %p92 = por %p90, %p91
      %p93 = scmp.ne.s32.totalorder %s82, %s85
      %p94 = scmp.eq.s32.totalorder %s27, 1
      %p95 = por %p93, %p94
      %p96 = scmp.ne.s32.totalorder %s85, %s86
      %p97 = scmp.eq.s32.totalorder %s27, 0
      %p98 = por %p96, %p97
      %p99 = scmp.ne.s32.totalorder %s85, %s86
      %p100 = scmp.eq.s32.totalorder %s28, 1
      %p101 = por %p99, %p100
      %p103 = scmp.ne.s32.totalorder %s86, %s102
      %p104 = scmp.eq.s32.totalorder %s28, 0
      %p105 = por %p103, %p104
      %s106 = ssub.s32 %s29, %s41
      %p107 = scmp.eq.s32.totalorder %s106, 0
      %s109 = sadd.s32 %s108, 1
      %s110 = scalar_select %p107, %s108, %s109
      %p113 = pneg %p107
      %p114 = scmp.eq.s32.totalorder %s22, 1
      %p115 = por %p113, %p114
      %p116 = scmp.ne.s32.totalorder %s108, %s111
      %p117 = scmp.eq.s32.totalorder %s22, 0
      %p118 = por %p116, %p117
      %p119 = scmp.ne.s32.totalorder %s108, %s111
      %p120 = scmp.eq.s32.totalorder %s27, 1
      %p121 = por %p119, %p120
      %p122 = scmp.ne.s32.totalorder %s111, %s112
      %p123 = scmp.eq.s32.totalorder %s27, 0
      %p124 = por %p122, %p123
      %p125 = scmp.ne.s32.totalorder %s111, %s112
      %p126 = scmp.eq.s32.totalorder %s28, 1
      %p127 = por %p125, %p126
      %p129 = scmp.ne.s32.totalorder %s112, %s128
      %p130 = scmp.eq.s32.totalorder %s28, 0
      %p131 = por %p129, %p130
      %s132 = ssub.s32 %s29, %s41
      %p133 = scmp.eq.s32.totalorder %s132, 0
      %s135 = sadd.s32 %s134, 1
      %s136 = scalar_select %p133, %s134, %s135
      %p139 = pneg %p133
      %p140 = scmp.eq.s32.totalorder %s22, 1
      %p141 = por %p139, %p140
      %p142 = scmp.ne.s32.totalorder %s134, %s137
      %p143 = scmp.eq.s32.totalorder %s22, 0
      %p144 = por %p142, %p143
      %p145 = scmp.ne.s32.totalorder %s134, %s137
      %p146 = scmp.eq.s32.totalorder %s27, 1
      %p147 = por %p145, %p146
      %p148 = scmp.ne.s32.totalorder %s137, %s138
      %p149 = scmp.eq.s32.totalorder %s27, 0
      %p150 = por %p148, %p149
      %p151 = scmp.ne.s32.totalorder %s137, %s138
      %p152 = scmp.eq.s32.totalorder %s28, 1
      %p153 = por %p151, %p152
      %p155 = scmp.ne.s32.totalorder %s138, %s154
      %p156 = scmp.eq.s32.totalorder %s28, 0
      %p157 = por %p155, %p156
      %p158 = scmp.le.s32.totalorder 1, %s22
      %p159 = scmp.lt.s32.totalorder %s22, 3
      %p160 = pnand %p158, %p159
      %p161 = pneg %p160
      // Predicated region
      $region9: #{tpu_custom_call.1} parent=5 // pred_check
        _
      $region10: #{tpu_custom_call.1} parent=5 // pred_check_branch
        %163 = sbr.rel (%p160) target = $region12
      $region11: #{tpu_custom_call.1} parent=5 // pred_region
        %s164 = ssub.s32 %s22, 1
      $region12: #{tpu_custom_call.1} parent=5 // pred_fallthru
        _
      %p165 = scmp.lt.s32.totalorder %s22, 2
      // Predicated region
      $region13: #{tpu_custom_call.1} parent=5 // pred_check
        %p166 = pneg %p165
      $region14: #{tpu_custom_call.1} parent=5 // pred_check_branch
        %168 = sbr.rel (%p166) target = $region16
      $region15: #{tpu_custom_call.1} parent=5 // pred_region
        // Predicated region
        $region17: #{tpu_custom_call.1} parent=15 // pred_check
          %p169 = pneg %p60
        $region18: #{tpu_custom_call.1} parent=15 // pred_check_branch
          %171 = sbr.rel (%p169) target = $region20
        $region19: #{tpu_custom_call.1} parent=15 // pred_region
          %s172 = sand.u32 %s50, 1
          %s173 = scalar_lea.sflag [#allocation3], %s172
          %s174 = sand.u32 %s50, 1
          %s175 = smul.addr %s174, 16
          %s176 = scalar_lea.vmem [#allocation2], %s175
          %s177 = sadd.s32 %s29, %s30
          %p178 = scmp.lt.s32.totalorder %s177, 0
          %s179 = scalar_select %p178, %s177, 0
          %s180 = smul.u32 2, %s179
          %182 = vsyncadd %s173, 0
          %s183 = smul.addr %s180, 8
          %s184 = scalar_lea.hbm %s0, %s183
          %s185 = sshll.u32 %s184, 4
          %s186 = int_to_ptr.hbm [resolvable:$true] %s185
          %s187 = sshll.u32 %s176, 4
          %s188 = int_to_ptr.vmem [resolvable:$true] %s187
          %193 = dma.hbm_to_vmem [thread:$0]  %s186, 256, %s188, %s173, 128, 128, 8
        $region20: #{tpu_custom_call.1} parent=15 // pred_fallthru
          _
        // Predicated region
        $region21: #{tpu_custom_call.1} parent=15 // pred_check
          %p194 = pneg %p92
        $region22: #{tpu_custom_call.1} parent=15 // pred_check_branch
          %196 = sbr.rel (%p194) target = $region24
        $region23: #{tpu_custom_call.1} parent=15 // pred_region
          %s197 = sand.u32 %s82, 1
          %s198 = scalar_lea.sflag [#allocation6], %s197
          %s199 = sand.u32 %s82, 1
          %s200 = smul.addr %s199, 16
          %s201 = scalar_lea.vmem [#allocation5], %s200
          %s202 = sadd.s32 %s29, %s30
          %p203 = scmp.lt.s32.totalorder %s202, 0
          %s204 = scalar_select %p203, %s202, 0
          %s205 = smul.u32 2, %s204
          %207 = vsyncadd %s198, 0
          %s208 = smul.addr %s205, 8
          %s209 = scalar_lea.hbm %s1, %s208
          %s210 = sshll.u32 %s209, 4
          %s211 = int_to_ptr.hbm [resolvable:$true] %s210
          %s212 = sshll.u32 %s201, 4
          %s213 = int_to_ptr.vmem [resolvable:$true] %s212
          %218 = dma.hbm_to_vmem [thread:$0]  %s211, 256, %s213, %s198, 128, 128, 8
        $region24: #{tpu_custom_call.1} parent=15 // pred_fallthru
          _
      $region16: #{tpu_custom_call.1} parent=5 // pred_fallthru
        _
      %p219 = scmp.le.s32.totalorder 1, %s22
      %p220 = scmp.lt.s32.totalorder %s22, 3
      %p221 = pnand %p219, %p220
      %p222 = pneg %p221
      // Predicated region
      $region25: #{tpu_custom_call.1} parent=5 // pred_check
        _
      $region26: #{tpu_custom_call.1} parent=5 // pred_check_branch
        %224 = sbr.rel (%p221) target = $region28
      $region27: #{tpu_custom_call.1} parent=5 // pred_region
        %s225 = ssub.s32 %s22, 1
        %s226 = sand.u32 %s53, 1
        %s227 = scalar_lea.sflag [#allocation3], %s226
        %s228 = sand.u32 %s53, 1
        %s229 = smul.addr %s228, 16
        %s230 = scalar_lea.vmem [#allocation2], %s229
        // Predicated region
        $region29: #{tpu_custom_call.1} parent=27 // pred_check
          %p231 = pneg %p66
        $region30: #{tpu_custom_call.1} parent=27 // pred_check_branch
          %233 = sbr.rel (%p231) target = $region32
        $region31: #{tpu_custom_call.1} parent=27 // pred_region
          %235 = dma.done %s227, 256
        $region32: #{tpu_custom_call.1} parent=27 // pred_fallthru
          _
        %s236 = sand.u32 %s85, 1
        %s237 = scalar_lea.sflag [#allocation6], %s236
        %s238 = sand.u32 %s85, 1
        %s239 = smul.addr %s238, 16
        %s240 = scalar_lea.vmem [#allocation5], %s239
        // Predicated region
        $region33: #{tpu_custom_call.1} parent=27 // pred_check
          %p241 = pneg %p98
        $region34: #{tpu_custom_call.1} parent=27 // pred_check_branch
          %243 = sbr.rel (%p241) target = $region36
        $region35: #{tpu_custom_call.1} parent=27 // pred_region
          %245 = dma.done %s237, 256
        $region36: #{tpu_custom_call.1} parent=27 // pred_fallthru
          _
        %s246 = sand.u32 %s53, 1
        %s247 = scalar_lea.sflag [#allocation3], %s246
        %s248 = sand.u32 %s53, 1
        %s249 = smul.addr %s248, 16
        %s250 = scalar_lea.vmem [#allocation2], %s249
        %p251 = pneg %p66
        %p252 = pneg %p63
        %s253 = sand.u32 %s85, 1
        %s254 = scalar_lea.sflag [#allocation6], %s253
        %s255 = sand.u32 %s85, 1
        %s256 = smul.addr %s255, 16
        %s257 = scalar_lea.vmem [#allocation5], %s256
        %p258 = pneg %p98
        %p259 = pneg %p95
        %p260 = pneg %p124
        %p261 = pneg %p121
        %s262 = sand.u32 %s111, 1
        %s263 = scalar_lea.sflag [#allocation4], %s262
        %s264 = sand.u32 %s111, 1
        %s265 = smul.addr %s264, 8
        %s266 = scalar_lea.vmem [#allocation7], %s265
        %p267 = pneg %p150
        %p268 = pneg %p147
        %s269 = sand.u32 %s137, 1
        %s270 = scalar_lea.sflag [#allocation9], %s269
        %s271 = sand.u32 %s137, 1
        %s272 = smul.addr %s271, 8
        %s273 = scalar_lea.vmem [#allocation8], %s272
        %s274 = sadd.s32 %s31, %s32
        %p275 = scmp.lt.s32.totalorder %s274, 0
        %s276 = scalar_select %p275, %s274, 0
        %s277 = smul.u32 2, %s276
        %s278 = sadd.s32 %s31, %s32
        %p279 = scmp.lt.s32.totalorder %s278, 0
        %s280 = scalar_select %p279, %s278, 0
        %s281 = smul.u32 2, %s280
        %s282 = sadd.s32 %s31, %s32
        %p283 = scmp.eq.s32.totalorder %s32, 0
        // Predicated region
        $region37: #{tpu_custom_call.1} parent=27 // pred_check
          %p284 = pneg %p283
        $region38: #{tpu_custom_call.1} parent=27 // pred_check_branch
          %286 = sbr.rel (%p284) target = $region40
        $region39: #{tpu_custom_call.1} parent=27 // pred_region
          %287 = vst [vmem:[%s266] sm:$0xff] 0.0
          %288 = vst [vmem:[%s273] sm:$0xff] 0.0
        $region40: #{tpu_custom_call.1} parent=27 // pred_fallthru
          _
        %p289 = scmp.lt.s32.totalorder %s282, 1
        // Predicated region
        $region41: #{tpu_custom_call.1} parent=27 // pred_check
          %p290 = pneg %p289
        $region42: #{tpu_custom_call.1} parent=27 // pred_check_branch
          %292 = sbr.rel (%p290) target = $region44
        $region43: #{tpu_custom_call.1} parent=27 // pred_region
          %v293 = vld [vmem:[%s230] sm:$0xff]
          %v294 = vld [vmem:[%s230 + $0x8] sm:$0xff]
          %v295 = vld [vmem:[%s240] sm:$0xff]
          %v296 = vld [vmem:[%s240 + $0x8] sm:$0xff]
          %v297 = vmul.f32 %v293, 0.5
          %v298 = vmul.f32 %v294, 0.5
          %v299 = vtanh.pop %v297
          %v300 = vtanh.pop %v298
          %v301 = vmul.f32 %v299, 0.5
          %v302 = vmul.f32 %v300, 0.5
          %v303 = vadd.f32 %v301, 0.5
          %v304 = vadd.f32 %v302, 0.5
          %v305 = vmul.f32 %v303, %v295
          %v306 = vmul.f32 %v304, %v296
          %v307 = vadd.f32 %v305, %v306
          %v308 = vadd.f32 %v303, %v295
          %v309 = vadd.f32 %v304, %v296
          %v310 = vadd.f32 %v308, %v309
          %v311 = vld [vmem:[%s266] sm:$0xff]
          %v312 = vadd.f32 %v311, %v307
          %313 = vst [vmem:[%s266] sm:$0xff] %v312
          %v314 = vld [vmem:[%s273] sm:$0xff]
          %v315 = vadd.f32 %v314, %v310
          %316 = vst [vmem:[%s273] sm:$0xff] %v315
        $region44: #{tpu_custom_call.1} parent=27 // pred_fallthru
          _
        %s317 = sand.u32 %s111, 1
        %s318 = scalar_lea.sflag [#allocation4], %s317
        %s319 = sand.u32 %s111, 1
        %s320 = smul.addr %s319, 8
        %s321 = scalar_lea.vmem [#allocation7], %s320
        %s322 = sand.u32 %s137, 1
        %s323 = scalar_lea.sflag [#allocation9], %s322
        %s324 = sand.u32 %s137, 1
        %s325 = smul.addr %s324, 8
        %s326 = scalar_lea.vmem [#allocation8], %s325
        // Predicated region
        $region45: #{tpu_custom_call.1} parent=27 // pred_check
          %p327 = pneg %p121
        $region46: #{tpu_custom_call.1} parent=27 // pred_check_branch
          %329 = sbr.rel (%p327) target = $region48
        $region47: #{tpu_custom_call.1} parent=27 // pred_region
          %331 = vsyncadd %s318, 0
          %s332 = smul.addr %s31, 8
          %s333 = scalar_lea.hbm %s2, %s332
          %s335 = sshll.u32 %s321, 4
          %s336 = int_to_ptr.vmem [resolvable:$true] %s335
          %s337 = sshll.u32 %s333, 4
          %s338 = int_to_ptr.hbm [resolvable:$true] %s337
          %340 = dma.vmem_to_hbm [thread:$0]  %s336, 128, %s338, %s318
        $region48: #{tpu_custom_call.1} parent=27 // pred_fallthru
          _
        // Predicated region
        $region49: #{tpu_custom_call.1} parent=27 // pred_check
          %p341 = pneg %p147
        $region50: #{tpu_custom_call.1} parent=27 // pred_check_branch
          %343 = sbr.rel (%p341) target = $region52
        $region51: #{tpu_custom_call.1} parent=27 // pred_region
          %345 = vsyncadd %s323, 0
          %s346 = smul.addr %s31, 8
          %s347 = scalar_lea.hbm %s3, %s346
          %s349 = sshll.u32 %s326, 4
          %s350 = int_to_ptr.vmem [resolvable:$true] %s349
          %s351 = sshll.u32 %s347, 4
          %s352 = int_to_ptr.hbm [resolvable:$true] %s351
          %354 = dma.vmem_to_hbm [thread:$0]  %s350, 128, %s352, %s323
        $region52: #{tpu_custom_call.1} parent=27 // pred_fallthru
          _
      $region28: #{tpu_custom_call.1} parent=5 // pred_fallthru
        _
      %p355 = scmp.le.s32.totalorder 2, %s22
      // Predicated region
      $region53: #{tpu_custom_call.1} parent=5 // pred_check
        %p356 = pneg %p355
      $region54: #{tpu_custom_call.1} parent=5 // pred_check_branch
        %358 = sbr.rel (%p356) target = $region56
      $region55: #{tpu_custom_call.1} parent=5 // pred_region
        %s359 = ssub.s32 %s22, 2
        // Predicated region
        $region57: #{tpu_custom_call.1} parent=55 // pred_check
          %p360 = pneg %p127
        $region58: #{tpu_custom_call.1} parent=55 // pred_check_branch
          %362 = sbr.rel (%p360) target = $region60
        $region59: #{tpu_custom_call.1} parent=55 // pred_region
          %s363 = sand.u32 %s112, 1
          %s364 = scalar_lea.sflag [#allocation4], %s363
          %s365 = sand.u32 %s112, 1
          %s366 = smul.addr %s365, 8
          %s367 = scalar_lea.vmem [#allocation7], %s366
          %369 = dma.done %s364, 128
        $region60: #{tpu_custom_call.1} parent=55 // pred_fallthru
          _
        // Predicated region
        $region61: #{tpu_custom_call.1} parent=55 // pred_check
          %p370 = pneg %p153
        $region62: #{tpu_custom_call.1} parent=55 // pred_check_branch
          %372 = sbr.rel (%p370) target = $region64
        $region63: #{tpu_custom_call.1} parent=55 // pred_region
          %s373 = sand.u32 %s138, 1
          %s374 = scalar_lea.sflag [#allocation9], %s373
          %s375 = sand.u32 %s138, 1
          %s376 = smul.addr %s375, 8
          %s377 = scalar_lea.vmem [#allocation8], %s376
          %379 = dma.done %s374, 128
        $region64: #{tpu_custom_call.1} parent=55 // pred_fallthru
          _
      $region56: #{tpu_custom_call.1} parent=5 // pred_fallthru
        _
    $region6: #{tpu_custom_call.1} parent=1 // loop_footer
      %s26 = sadd.s32 1, %s22
    $region7: #{tpu_custom_call.1} parent=1 // loop_footer_branch
      %21 = sbr.rel target = $region3
    $region8: #{tpu_custom_call.1} parent=1 // loop_exit
      _
    %380 = vsyncpa [#allocation3], 1
    %s381 = scalar_lea.sflag [#allocation3], 1
    %382 = vsyncpa %s381, 1
    %383 = vsyncpa [#allocation6], 1
    %s384 = scalar_lea.sflag [#allocation6], 1
    %385 = vsyncpa %s384, 1
    %386 = vsyncpa [#allocation4], 1
    %s387 = scalar_lea.sflag [#allocation4], 1
    %388 = vsyncpa %s387, 1
    %389 = vsyncpa [#allocation9], 1
    %s390 = scalar_lea.sflag [#allocation9], 1
    %391 = vsyncpa %s390, 1

</llo_original>
